<compile_context>
chip_gen: v5e
topology: v5e:2x2
jax: 0.10.0
libtpu: 0.0.40
codegen_flags: <defaults>
</compile_context>

<pallas_src>
import functools

import jax
import jax.numpy as jnp
import numpy as np
from jax.experimental import pallas as pl
from jax.experimental.pallas import tpu as pltpu


def _selector_constants(num_heads, head_dim, dtype):
    """Small constant 0/1 selector / fold matrices (built once on host, passed as kernel inputs)."""
    H, D = num_heads, head_dim
    E, HH, HE = H * D, H * H, H * H * D

    col = np.arange(HE)
    grp = col // E                 # head-group a wide column belongs to (query head h1 / value head h2)
    off = col % E                  # embedding index inside that group
    sub = off // D                 # head index of that embedding position
    lane = off % D                 # intra-head position
    f = np.arange(E)
    hh = np.arange(HH)
    a = hh // H                    # query head h1
    b = hh % H                     # key/value head h2

    # sel_qv[f, g*E+e]         = 1 iff f == g*D + e%D           (E,  HE)  q/v head-group expansion
    sel_qv = f[:, None] == (grp * D + lane)[None, :]
    # fold_s[h1*E+e, h1'*H+h2] = 1 iff h1==h1' and e//D==h2     (HE, HH)  fold kq -> scores
    fold_s = (grp[:, None] == a[None, :]) & (sub[:, None] == b[None, :])
    # gsum[a*H+b, a'*H+b']     = 1 iff a==a'                    (HH, HH)  group-sum + broadcast
    gsum = a[:, None] == a[None, :]
    # sel_w[h1*H+h2, h2'*E+e]  = 1 iff h2==h2' and e//D==h1     (HH, HE)  weight expansion
    sel_w = (b[:, None] == grp[None, :]) & (a[:, None] == sub[None, :])
    # fold_o[h2*E+e, e']       = 1 iff e==e'                    (HE, E)   fold w*v -> attn output
    fold_o = off[:, None] == f[None, :]
    # rep_k[f, g*E+e]          = 1 iff f == e                   (E,  HE)  repeat k once per query head
    rep_k = f[:, None] == off[None, :]

    return tuple(jnp.asarray(m.astype(np.float32), dtype)
                 for m in (sel_qv, fold_s, gsum, sel_w, fold_o, rep_k))


def mha_kqv_kernel(xq_ref, xk_ref, xv_ref,
                   wq_ref, bq_ref, wk_ref, bk_ref, wv_ref, bv_ref,
                   wo_ref, bo_ref,
                   sel_qv_ref, fold_s_ref, gsum_ref, sel_w_ref, fold_o_ref,
                   rep_k_ref, bexp_ref,
                   o_ref, *, scaling):
    f32, bf16 = jnp.float32, jnp.bfloat16

    # ---- projections: full-width (K = E) MXU matmuls, bf16 operands, f32 accumulation ----
    k = jnp.dot(xk_ref[...], wk_ref[...], preferred_element_type=f32) + bk_ref[...]     # (R, E)
    v = jnp.dot(xv_ref[...], wv_ref[...], preferred_element_type=f32) + bv_ref[...]     # (R, E)
    q = (jnp.dot(xq_ref[...], wq_ref[...], preferred_element_type=f32)
         + bq_ref[...]) * scaling                                                       # (BB, E)

    # ---- scores for all (query-head h1, key-head h2) pairs ----
    # qexp[b, h1*E+e]  = scale * q[b, h1*D + e%D]   (head-group expansion)
    # qrows[r, ...]    = qexp[batch(r), ...]        (batch->row broadcast as a tiny K=BB matmul)
    # krep[r, h1*E+e]  = k[r, e]                    (lane-repeat as a tiny constant matmul)
    qexp = jnp.dot(q.astype(bf16), sel_qv_ref[...], preferred_element_type=f32)          # (BB, HE)
    qrows = jnp.dot(bexp_ref[...], qexp.astype(bf16), preferred_element_type=f32)        # (R, HE)
    krep = jnp.dot(k.astype(bf16), rep_k_ref[...], preferred_element_type=f32)           # (R, HE)
    kq = krep * qrows                                                                    # (R, HE)
    s = jnp.dot(kq.astype(bf16), fold_s_ref[...], preferred_element_type=f32)            # (R, H*H)

    # ---- softmax over key heads (columns grouped by query head, h2 minor) ----
    # Per-row (global) max shift is mathematically exact for softmax; the group-wise
    # denominator + broadcast is one (HH, HH) matmul; reciprocal goes to the EUP slot.
    s = s - jnp.max(s, axis=-1, keepdims=True)
    e_s = jnp.exp(s)                                                                     # (R, H*H)
    denom = jnp.dot(e_s.astype(bf16), gsum_ref[...], preferred_element_type=f32)         # (R, H*H)
    w = e_s * pl.reciprocal(denom, approx=True)                                          # (R, H*H)
    # dropout(p=0.0) == identity

    # ---- attention output assembled as one lane-wide slab, then a single K=E out_proj matmul ----
    wexp = jnp.dot(w.astype(bf16), sel_w_ref[...], preferred_element_type=f32)           # (R, HE)
    vexp = jnp.dot(v.astype(bf16), sel_qv_ref[...], preferred_element_type=f32)          # (R, HE)
    attn = jnp.dot((wexp * vexp).astype(bf16), fold_o_ref[...],
                   preferred_element_type=f32)                                           # (R, E)
    out = jnp.dot(attn.astype(bf16), wo_ref[...], preferred_element_type=f32) + bo_ref[...]
    o_ref[...] = out.astype(o_ref.dtype)                                                 # (R, O_pad)


def mha_kqv(xk, xq, xv, params, num_heads, *, batch_tiles=1, compute_dtype=jnp.bfloat16):
    B, C, L, E = xk.shape
    P = C * L
    H = num_heads
    assert E % H == 0, "embed_dim not divisible by num_heads"
    D = E // H
    HH, HE = H * H, H * E
    O = params["wo"].shape[1]
    O_pad = pl.cdiv(O, 128) * 128          # lane-dense output minor dim -> unmasked vector stores
    assert B % batch_tiles == 0
    bb = B // batch_tiles                  # batches per grid step (default: all of them)
    R = bb * P

    cd = compute_dtype
    xq_c = xq.astype(cd)
    xk_c = xk.reshape(B * P, E).astype(cd)
    xv_c = xv.reshape(B * P, E).astype(cd)
    wq = params["wq"].astype(cd)
    wk = params["wk"].astype(cd)
    wv = params["wv"].astype(cd)
    wo = jnp.zeros((E, O_pad), cd).at[:, :O].set(params["wo"].astype(cd))
    bo = jnp.zeros((1, O_pad), jnp.float32).at[:, :O].set(params["bo"].astype(jnp.float32))
    bq = params["bq"].astype(jnp.float32)
    bk = params["bk"].astype(jnp.float32)
    bv = params["bv"].astype(jnp.float32)
    sel_qv, fold_s, gsum, sel_w, fold_o, rep_k = _selector_constants(H, D, cd)
    # bexp[r, b] = 1 iff r // P == b  (local batch-to-row broadcast matrix)
    bexp = jnp.asarray(np.kron(np.eye(bb), np.ones((P, 1))).astype(np.float32), cd)       # (R, bb)

    kernel = functools.partial(mha_kqv_kernel, scaling=float(D) ** -0.5)

    def const(t):
        return (0, 0)

    out = pl.pallas_call(
        kernel,
        out_shape=jax.ShapeDtypeStruct((B * P, O_pad), jnp.float32),
        grid_spec=pltpu.PrefetchScalarGridSpec(
            num_scalar_prefetch=0,
            grid=(batch_tiles,),                               # default 1: single step (v5e/v6e);
            in_specs=[                                         # batch_tiles=2 shards over v7x's 2 TCs
                pl.BlockSpec((bb, E), lambda t: (t, 0)),       # xq (resident whole-batch block)
                pl.BlockSpec((R, E), lambda t: (t, 0)),        # xk (batch folded into rows)
                pl.BlockSpec((R, E), lambda t: (t, 0)),        # xv
                pl.BlockSpec((E, E), const),                   # Wq
                pl.BlockSpec((1, E), const),                   # bq
                pl.BlockSpec((E, E), const),                   # Wk
                pl.BlockSpec((1, E), const),                   # bk
                pl.BlockSpec((E, E), const),                   # Wv
                pl.BlockSpec((1, E), const),                   # bv
                pl.BlockSpec((E, O_pad), const),               # Wo (zero-padded to lane-dense width)
                pl.BlockSpec((1, O_pad), const),               # bo
                pl.BlockSpec((E, HE), const),                  # SEL_QV
                pl.BlockSpec((HE, HH), const),                 # FOLD_S
                pl.BlockSpec((HH, HH), const),                 # GSUM
                pl.BlockSpec((HH, HE), const),                 # SEL_W
                pl.BlockSpec((HE, E), const),                  # FOLD_O
                pl.BlockSpec((E, HE), const),                  # REP_K
                pl.BlockSpec((R, bb), const),                  # BEXP
            ],
            out_specs=pl.BlockSpec((R, O_pad), lambda t: (t, 0)),
        ),
        compiler_params=pltpu.CompilerParams(
            dimension_semantics=("parallel",)),
    )(xq_c, xk_c, xv_c, wq, bq, wk, bk, wv, bv, wo, bo,
      sel_qv, fold_s, gsum, sel_w, fold_o, rep_k, bexp)

    # TODO(synk): at production sizes on v7x (64 MiB VMEM) add a P-tiling grid axis and set
    #             pltpu.CompilerParams(vmem_limit_bytes=...) instead of one full (B*P, E) slab.
    return out[:, :O].reshape(B, C, L, O)


def mha_kqv_reference(xk, xq, xv, params, num_heads):
    """Pure-JAX f32 reference mirroring the PyTorch forward."""
    B, C, L, E = xk.shape
    H = num_heads
    D = E // H
    P = C * L
    scaling = float(D) ** -0.5
    q = xq @ params["wq"] + params["bq"][0]                                  # (B, E)
    k = xk.reshape(B, P, E) @ params["wk"] + params["bk"][0]                 # (B, P, E)
    v = xv.reshape(B, P, E) @ params["wv"] + params["bv"][0]                 # (B, P, E)
    qh = q.reshape(B, H, D)
    kh = k.reshape(B, P, H, D)
    vh = v.reshape(B, P, H, D)
    w = scaling * jnp.einsum("bad,bpcd->bpac", qh, kh)                       # (B, P, H, H)
    w = jax.nn.softmax(w, axis=-1)
    o = jnp.einsum("bpac,bpcd->bpad", w, vh).reshape(B, P, E)
    out = o @ params["wo"] + params["bo"][0]
    return out.reshape(B, C, L, -1)


if __name__ == "__main__":
    def run_case(seed_key, B, C, L, E, H, O):
        ks = jax.random.split(seed_key, 11)

        def make_linear(kw, kb, fan_in, fan_out):
            w = (jax.random.normal(kw, (fan_in, fan_out), jnp.float32)
                 / jnp.sqrt(jnp.float32(fan_in)))
            b = 0.01 * jax.random.normal(kb, (1, fan_out), jnp.float32)
            return w, b

        wq, bq = make_linear(ks[0], ks[1], E, E)
        wk, bk = make_linear(ks[2], ks[3], E, E)
        wv, bv = make_linear(ks[4], ks[5], E, E)
        wo, bo = make_linear(ks[6], ks[7], E, O)
        params = dict(wq=wq, bq=bq, wk=wk, bk=bk, wv=wv, bv=bv, wo=wo, bo=bo)

        xk = jax.random.normal(ks[8], (B, C, L, E), jnp.float32)
        xv = jax.random.normal(ks[9], (B, C, L, E), jnp.float32)
        xq = jax.random.normal(ks[10], (B, E), jnp.float32)

        out = jax.block_until_ready(mha_kqv(xk, xq, xv, params, num_heads=H))
        ref = jax.block_until_ready(mha_kqv_reference(xk, xq, xv, params, num_heads=H))
        # bf16 MXU operands (f32 accumulation) -> compare at a slightly looser tolerance than pure f32.
        np.testing.assert_allclose(np.asarray(out), np.asarray(ref), rtol=2e-2, atol=3e-2)

    root = jax.random.PRNGKey(0)
    k1, k2 = jax.random.split(root)

    # Geometry A: exactly what model_emo_mh implies (Di2=32, Fc2=64):
    #   embed_dim=(32-16)//2=8, num_heads=8 (head_dim=1), out_proj width=64, channels=4.
    run_case(k1, B=2, C=4, L=8, E=8, H=8, O=64)
    # Geometry B: wider-head variant (embed_dim=32, num_heads=4, head_dim=8).
    run_case(k2, B=2, C=4, L=8, E=32, H=4, O=64)

    print("KERNEL_OK")
</pallas_src>

<mosaic_0001>
module attributes {stable_mosaic.version = 11 : i64} {
  func.func @mha_kqv_kernel(%arg0: i32, %arg1: memref<2x8xbf16, #tpu.memory_space<vmem>>, %arg2: memref<64x8xbf16, #tpu.memory_space<vmem>>, %arg3: memref<64x8xbf16, #tpu.memory_space<vmem>>, %arg4: memref<8x8xbf16, #tpu.memory_space<vmem>>, %arg5: memref<1x8xf32, #tpu.memory_space<vmem>>, %arg6: memref<8x8xbf16, #tpu.memory_space<vmem>>, %arg7: memref<1x8xf32, #tpu.memory_space<vmem>>, %arg8: memref<8x8xbf16, #tpu.memory_space<vmem>>, %arg9: memref<1x8xf32, #tpu.memory_space<vmem>>, %arg10: memref<8x128xbf16, #tpu.memory_space<vmem>>, %arg11: memref<1x128xf32, #tpu.memory_space<vmem>>, %arg12: memref<8x64xbf16, #tpu.memory_space<vmem>>, %arg13: memref<64x64xbf16, #tpu.memory_space<vmem>>, %arg14: memref<64x64xbf16, #tpu.memory_space<vmem>>, %arg15: memref<64x64xbf16, #tpu.memory_space<vmem>>, %arg16: memref<64x8xbf16, #tpu.memory_space<vmem>>, %arg17: memref<8x64xbf16, #tpu.memory_space<vmem>>, %arg18: memref<64x2xbf16, #tpu.memory_space<vmem>>, %arg19: memref<64x128xf32, #tpu.memory_space<vmem>>) attributes {dimension_semantics = [#tpu.dimension_semantics<parallel>], iteration_bounds = array<i64: 1>, scalar_prefetch = 0 : i64, scratch_operands = 0 : i64, tpu.core_type = #tpu.core_type<tc>, window_params = [{transform_indices = @transform_0, window_bounds = array<i64: 2, 8>}, {transform_indices = @transform_1, window_bounds = array<i64: 64, 8>}, {transform_indices = @transform_2, window_bounds = array<i64: 64, 8>}, {pipeline_mode = #tpu.pipeline_mode<synchronous>, transform_indices = @transform_3, window_bounds = array<i64: 8, 8>}, {pipeline_mode = #tpu.pipeline_mode<synchronous>, transform_indices = @transform_4, window_bounds = array<i64: 1, 8>}, {pipeline_mode = #tpu.pipeline_mode<synchronous>, transform_indices = @transform_5, window_bounds = array<i64: 8, 8>}, {pipeline_mode = #tpu.pipeline_mode<synchronous>, transform_indices = @transform_6, window_bounds = array<i64: 1, 8>}, {pipeline_mode = #tpu.pipeline_mode<synchronous>, transform_indices = @transform_7, window_bounds = array<i64: 8, 8>}, {pipeline_mode = #tpu.pipeline_mode<synchronous>, transform_indices = @transform_8, window_bounds = array<i64: 1, 8>}, {pipeline_mode = #tpu.pipeline_mode<synchronous>, transform_indices = @transform_9, window_bounds = array<i64: 8, 128>}, {pipeline_mode = #tpu.pipeline_mode<synchronous>, transform_indices = @transform_10, window_bounds = array<i64: 1, 128>}, {pipeline_mode = #tpu.pipeline_mode<synchronous>, transform_indices = @transform_11, window_bounds = array<i64: 8, 64>}, {pipeline_mode = #tpu.pipeline_mode<synchronous>, transform_indices = @transform_12, window_bounds = array<i64: 64, 64>}, {pipeline_mode = #tpu.pipeline_mode<synchronous>, transform_indices = @transform_13, window_bounds = array<i64: 64, 64>}, {pipeline_mode = #tpu.pipeline_mode<synchronous>, transform_indices = @transform_14, window_bounds = array<i64: 64, 64>}, {pipeline_mode = #tpu.pipeline_mode<synchronous>, transform_indices = @transform_15, window_bounds = array<i64: 64, 8>}, {pipeline_mode = #tpu.pipeline_mode<synchronous>, transform_indices = @transform_16, window_bounds = array<i64: 8, 64>}, {pipeline_mode = #tpu.pipeline_mode<synchronous>, transform_indices = @transform_17, window_bounds = array<i64: 64, 2>}, {transform_indices = @transform_18, window_bounds = array<i64: 64, 128>}]} {
    %c0 = arith.constant 0 : index
    %c0_0 = arith.constant 0 : index
    %0 = vector.load %arg2[%c0, %c0_0] : memref<64x8xbf16, #tpu.memory_space<vmem>>, vector<64x8xbf16>
    %c0_1 = arith.constant 0 : index
    %c0_2 = arith.constant 0 : index
    %1 = vector.load %arg6[%c0_1, %c0_2] : memref<8x8xbf16, #tpu.memory_space<vmem>>, vector<8x8xbf16>
    %cst = arith.constant dense<0.000000e+00> : vector<64x8xf32>
    %2 = tpu.matmul %0, %1, %cst {dimension_numbers = #tpu.dot_dimension_numbers<[1], [0], [0], [1], [0, 0, 1, 1], [], []>} : vector<64x8xbf16>, vector<8x8xbf16>, vector<64x8xf32> -> vector<64x8xf32>
    %c0_3 = arith.constant 0 : index
    %c0_4 = arith.constant 0 : index
    %3 = vector.load %arg7[%c0_3, %c0_4] : memref<1x8xf32, #tpu.memory_space<vmem>>, vector<1x8xf32>
    %4 = vector.broadcast %3 : vector<1x8xf32> to vector<64x8xf32>
    %5 = arith.addf %2, %4 : vector<64x8xf32>
    %c0_5 = arith.constant 0 : index
    %c0_6 = arith.constant 0 : index
    %6 = vector.load %arg3[%c0_5, %c0_6] : memref<64x8xbf16, #tpu.memory_space<vmem>>, vector<64x8xbf16>
    %c0_7 = arith.constant 0 : index
    %c0_8 = arith.constant 0 : index
    %7 = vector.load %arg8[%c0_7, %c0_8] : memref<8x8xbf16, #tpu.memory_space<vmem>>, vector<8x8xbf16>
    %cst_9 = arith.constant dense<0.000000e+00> : vector<64x8xf32>
    %8 = tpu.matmul %6, %7, %cst_9 {dimension_numbers = #tpu.dot_dimension_numbers<[1], [0], [0], [1], [0, 0, 1, 1], [], []>} : vector<64x8xbf16>, vector<8x8xbf16>, vector<64x8xf32> -> vector<64x8xf32>
    %c0_10 = arith.constant 0 : index
    %c0_11 = arith.constant 0 : index
    %9 = vector.load %arg9[%c0_10, %c0_11] : memref<1x8xf32, #tpu.memory_space<vmem>>, vector<1x8xf32>
    %10 = vector.broadcast %9 : vector<1x8xf32> to vector<64x8xf32>
    %11 = arith.addf %8, %10 : vector<64x8xf32>
    %c0_12 = arith.constant 0 : index
    %c0_13 = arith.constant 0 : index
    %12 = vector.load %arg1[%c0_12, %c0_13] : memref<2x8xbf16, #tpu.memory_space<vmem>>, vector<2x8xbf16>
    %c0_14 = arith.constant 0 : index
    %c0_15 = arith.constant 0 : index
    %13 = vector.load %arg4[%c0_14, %c0_15] : memref<8x8xbf16, #tpu.memory_space<vmem>>, vector<8x8xbf16>
    %cst_16 = arith.constant dense<0.000000e+00> : vector<2x8xf32>
    %14 = tpu.matmul %12, %13, %cst_16 {dimension_numbers = #tpu.dot_dimension_numbers<[1], [0], [0], [1], [0, 0, 1, 1], [], []>} : vector<2x8xbf16>, vector<8x8xbf16>, vector<2x8xf32> -> vector<2x8xf32>
    %c0_17 = arith.constant 0 : index
    %c0_18 = arith.constant 0 : index
    %15 = vector.load %arg5[%c0_17, %c0_18] : memref<1x8xf32, #tpu.memory_space<vmem>>, vector<1x8xf32>
    %16 = vector.broadcast %15 : vector<1x8xf32> to vector<2x8xf32>
    %17 = arith.addf %14, %16 : vector<2x8xf32>
    %cst_19 = arith.constant 1.000000e+00 : f32
    %18 = vector.broadcast %cst_19 : f32 to vector<2x8xf32>
    %19 = arith.mulf %17, %18 : vector<2x8xf32>
    %20 = arith.truncf %19 : vector<2x8xf32> to vector<2x8xbf16>
    %c0_20 = arith.constant 0 : index
    %c0_21 = arith.constant 0 : index
    %21 = vector.load %arg12[%c0_20, %c0_21] : memref<8x64xbf16, #tpu.memory_space<vmem>>, vector<8x64xbf16>
    %cst_22 = arith.constant dense<0.000000e+00> : vector<2x64xf32>
    %22 = tpu.matmul %20, %21, %cst_22 {dimension_numbers = #tpu.dot_dimension_numbers<[1], [0], [0], [1], [0, 0, 1, 1], [], []>} : vector<2x8xbf16>, vector<8x64xbf16>, vector<2x64xf32> -> vector<2x64xf32>
    %c0_23 = arith.constant 0 : index
    %c0_24 = arith.constant 0 : index
    %23 = vector.load %arg18[%c0_23, %c0_24] : memref<64x2xbf16, #tpu.memory_space<vmem>>, vector<64x2xbf16>
    %24 = arith.truncf %22 : vector<2x64xf32> to vector<2x64xbf16>
    %cst_25 = arith.constant dense<0.000000e+00> : vector<64x64xf32>
    %25 = tpu.matmul %23, %24, %cst_25 {dimension_numbers = #tpu.dot_dimension_numbers<[1], [0], [0], [1], [0, 0, 1, 1], [], []>} : vector<64x2xbf16>, vector<2x64xbf16>, vector<64x64xf32> -> vector<64x64xf32>
    %26 = arith.truncf %5 : vector<64x8xf32> to vector<64x8xbf16>
    %c0_26 = arith.constant 0 : index
    %c0_27 = arith.constant 0 : index
    %27 = vector.load %arg17[%c0_26, %c0_27] : memref<8x64xbf16, #tpu.memory_space<vmem>>, vector<8x64xbf16>
    %cst_28 = arith.constant dense<0.000000e+00> : vector<64x64xf32>
    %28 = tpu.matmul %26, %27, %cst_28 {dimension_numbers = #tpu.dot_dimension_numbers<[1], [0], [0], [1], [0, 0, 1, 1], [], []>} : vector<64x8xbf16>, vector<8x64xbf16>, vector<64x64xf32> -> vector<64x64xf32>
    %29 = arith.mulf %28, %25 : vector<64x64xf32>
    %30 = arith.truncf %29 : vector<64x64xf32> to vector<64x64xbf16>
    %c0_29 = arith.constant 0 : index
    %c0_30 = arith.constant 0 : index
    %31 = vector.load %arg13[%c0_29, %c0_30] : memref<64x64xbf16, #tpu.memory_space<vmem>>, vector<64x64xbf16>
    %cst_31 = arith.constant dense<0.000000e+00> : vector<64x64xf32>
    %32 = tpu.matmul %30, %31, %cst_31 {dimension_numbers = #tpu.dot_dimension_numbers<[1], [0], [0], [1], [0, 0, 1, 1], [], []>} : vector<64x64xbf16>, vector<64x64xbf16>, vector<64x64xf32> -> vector<64x64xf32>
    %cst_32 = arith.constant dense<0xFF800000> : vector<64xf32>
    %33 = vector.multi_reduction <maximumf>, %32, %cst_32 [1] : vector<64x64xf32> to vector<64xf32>
    %34 = vector.shape_cast %33 : vector<64xf32> to vector<64x1xf32>
    %35 = vector.broadcast %34 : vector<64x1xf32> to vector<64x64xf32>
    %36 = arith.subf %32, %35 : vector<64x64xf32>
    %37 = math.exp %36 : vector<64x64xf32>
    %38 = arith.truncf %37 : vector<64x64xf32> to vector<64x64xbf16>
    %c0_33 = arith.constant 0 : index
    %c0_34 = arith.constant 0 : index
    %39 = vector.load %arg14[%c0_33, %c0_34] : memref<64x64xbf16, #tpu.memory_space<vmem>>, vector<64x64xbf16>
    %cst_35 = arith.constant dense<0.000000e+00> : vector<64x64xf32>
    %40 = tpu.matmul %38, %39, %cst_35 {dimension_numbers = #tpu.dot_dimension_numbers<[1], [0], [0], [1], [0, 0, 1, 1], [], []>} : vector<64x64xbf16>, vector<64x64xbf16>, vector<64x64xf32> -> vector<64x64xf32>
    %41 = tpu.reciprocal %40 {approx = true} : vector<64x64xf32> -> vector<64x64xf32>
    %42 = arith.mulf %37, %41 : vector<64x64xf32>
    %43 = arith.truncf %42 : vector<64x64xf32> to vector<64x64xbf16>
    %c0_36 = arith.constant 0 : index
    %c0_37 = arith.constant 0 : index
    %44 = vector.load %arg15[%c0_36, %c0_37] : memref<64x64xbf16, #tpu.memory_space<vmem>>, vector<64x64xbf16>
    %cst_38 = arith.constant dense<0.000000e+00> : vector<64x64xf32>
    %45 = tpu.matmul %43, %44, %cst_38 {dimension_numbers = #tpu.dot_dimension_numbers<[1], [0], [0], [1], [0, 0, 1, 1], [], []>} : vector<64x64xbf16>, vector<64x64xbf16>, vector<64x64xf32> -> vector<64x64xf32>
    %46 = arith.truncf %11 : vector<64x8xf32> to vector<64x8xbf16>
    %c0_39 = arith.constant 0 : index
    %c0_40 = arith.constant 0 : index
    %47 = vector.load %arg12[%c0_39, %c0_40] : memref<8x64xbf16, #tpu.memory_space<vmem>>, vector<8x64xbf16>
    %cst_41 = arith.constant dense<0.000000e+00> : vector<64x64xf32>
    %48 = tpu.matmul %46, %47, %cst_41 {dimension_numbers = #tpu.dot_dimension_numbers<[1], [0], [0], [1], [0, 0, 1, 1], [], []>} : vector<64x8xbf16>, vector<8x64xbf16>, vector<64x64xf32> -> vector<64x64xf32>
    %49 = arith.mulf %45, %48 : vector<64x64xf32>
    %50 = arith.truncf %49 : vector<64x64xf32> to vector<64x64xbf16>
    %c0_42 = arith.constant 0 : index
    %c0_43 = arith.constant 0 : index
    %51 = vector.load %arg16[%c0_42, %c0_43] : memref<64x8xbf16, #tpu.memory_space<vmem>>, vector<64x8xbf16>
    %cst_44 = arith.constant dense<0.000000e+00> : vector<64x8xf32>
    %52 = tpu.matmul %50, %51, %cst_44 {dimension_numbers = #tpu.dot_dimension_numbers<[1], [0], [0], [1], [0, 0, 1, 1], [], []>} : vector<64x64xbf16>, vector<64x8xbf16>, vector<64x8xf32> -> vector<64x8xf32>
    %53 = arith.truncf %52 : vector<64x8xf32> to vector<64x8xbf16>
    %c0_45 = arith.constant 0 : index
    %c0_46 = arith.constant 0 : index
    %54 = vector.load %arg10[%c0_45, %c0_46] : memref<8x128xbf16, #tpu.memory_space<vmem>>, vector<8x128xbf16>
    %cst_47 = arith.constant dense<0.000000e+00> : vector<64x128xf32>
    %55 = tpu.matmul %53, %54, %cst_47 {dimension_numbers = #tpu.dot_dimension_numbers<[1], [0], [0], [1], [0, 0, 1, 1], [], []>} : vector<64x8xbf16>, vector<8x128xbf16>, vector<64x128xf32> -> vector<64x128xf32>
    %c0_48 = arith.constant 0 : index
    %c0_49 = arith.constant 0 : index
    %56 = vector.load %arg11[%c0_48, %c0_49] : memref<1x128xf32, #tpu.memory_space<vmem>>, vector<1x128xf32>
    %57 = vector.broadcast %56 : vector<1x128xf32> to vector<64x128xf32>
    %58 = arith.addf %55, %57 : vector<64x128xf32>
    %c0_50 = arith.constant 0 : index
    %c0_51 = arith.constant 0 : index
    %59 = vector.load %arg19[%c0_50, %c0_51] : memref<64x128xf32, #tpu.memory_space<vmem>>, vector<64x128xf32>
    tpu.vector_store %arg19[%c0_50, %c0_51], %58 {strides = array<i32>} : memref<64x128xf32, #tpu.memory_space<vmem>>, vector<64x128xf32>,
    return
  }
  func.func @transform_0(%arg0: i32) -> (i32, i32) {
    %c0_i32 = arith.constant 0 : i32
    %c0_i32_0 = arith.constant 0 : i32
    return %arg0, %c0_i32 : i32, i32
  }
  func.func @transform_1(%arg0: i32) -> (i32, i32) {
    %c0_i32 = arith.constant 0 : i32
    %c0_i32_0 = arith.constant 0 : i32
    return %arg0, %c0_i32 : i32, i32
  }
  func.func @transform_2(%arg0: i32) -> (i32, i32) {
    %c0_i32 = arith.constant 0 : i32
    %c0_i32_0 = arith.constant 0 : i32
    return %arg0, %c0_i32 : i32, i32
  }
  func.func @transform_3(%arg0: i32) -> (i32, i32) {
    %c0_i32 = arith.constant 0 : i32
    %c0_i32_0 = arith.constant 0 : i32
    %c0_i32_1 = arith.constant 0 : i32
    return %c0_i32, %c0_i32_0 : i32, i32
  }
  func.func @transform_4(%arg0: i32) -> (i32, i32) {
    %c0_i32 = arith.constant 0 : i32
    %c0_i32_0 = arith.constant 0 : i32
    %c0_i32_1 = arith.constant 0 : i32
    return %c0_i32, %c0_i32_0 : i32, i32
  }
  func.func @transform_5(%arg0: i32) -> (i32, i32) {
    %c0_i32 = arith.constant 0 : i32
    %c0_i32_0 = arith.constant 0 : i32
    %c0_i32_1 = arith.constant 0 : i32
    return %c0_i32, %c0_i32_0 : i32, i32
  }
  func.func @transform_6(%arg0: i32) -> (i32, i32) {
    %c0_i32 = arith.constant 0 : i32
    %c0_i32_0 = arith.constant 0 : i32
    %c0_i32_1 = arith.constant 0 : i32
    return %c0_i32, %c0_i32_0 : i32, i32
  }
  func.func @transform_7(%arg0: i32) -> (i32, i32) {
    %c0_i32 = arith.constant 0 : i32
    %c0_i32_0 = arith.constant 0 : i32
    %c0_i32_1 = arith.constant 0 : i32
    return %c0_i32, %c0_i32_0 : i32, i32
  }
  func.func @transform_8(%arg0: i32) -> (i32, i32) {
    %c0_i32 = arith.constant 0 : i32
    %c0_i32_0 = arith.constant 0 : i32
    %c0_i32_1 = arith.constant 0 : i32
    return %c0_i32, %c0_i32_0 : i32, i32
  }
  func.func @transform_9(%arg0: i32) -> (i32, i32) {
    %c0_i32 = arith.constant 0 : i32
    %c0_i32_0 = arith.constant 0 : i32
    %c0_i32_1 = arith.constant 0 : i32
    return %c0_i32, %c0_i32_0 : i32, i32
  }
  func.func @transform_10(%arg0: i32) -> (i32, i32) {
    %c0_i32 = arith.constant 0 : i32
    %c0_i32_0 = arith.constant 0 : i32
    %c0_i32_1 = arith.constant 0 : i32
    return %c0_i32, %c0_i32_0 : i32, i32
  }
  func.func @transform_11(%arg0: i32) -> (i32, i32) {
    %c0_i32 = arith.constant 0 : i32
    %c0_i32_0 = arith.constant 0 : i32
    %c0_i32_1 = arith.constant 0 : i32
    return %c0_i32, %c0_i32_0 : i32, i32
  }
  func.func @transform_12(%arg0: i32) -> (i32, i32) {
    %c0_i32 = arith.constant 0 : i32
    %c0_i32_0 = arith.constant 0 : i32
    %c0_i32_1 = arith.constant 0 : i32
    return %c0_i32, %c0_i32_0 : i32, i32
  }
  func.func @transform_13(%arg0: i32) -> (i32, i32) {
    %c0_i32 = arith.constant 0 : i32
    %c0_i32_0 = arith.constant 0 : i32
    %c0_i32_1 = arith.constant 0 : i32
    return %c0_i32, %c0_i32_0 : i32, i32
  }
  func.func @transform_14(%arg0: i32) -> (i32, i32) {
    %c0_i32 = arith.constant 0 : i32
    %c0_i32_0 = arith.constant 0 : i32
    %c0_i32_1 = arith.constant 0 : i32
    return %c0_i32, %c0_i32_0 : i32, i32
  }
  func.func @transform_15(%arg0: i32) -> (i32, i32) {
    %c0_i32 = arith.constant 0 : i32
    %c0_i32_0 = arith.constant 0 : i32
    %c0_i32_1 = arith.constant 0 : i32
    return %c0_i32, %c0_i32_0 : i32, i32
  }
  func.func @transform_16(%arg0: i32) -> (i32, i32) {
    %c0_i32 = arith.constant 0 : i32
    %c0_i32_0 = arith.constant 0 : i32
    %c0_i32_1 = arith.constant 0 : i32
    return %c0_i32, %c0_i32_0 : i32, i32
  }
  func.func @transform_17(%arg0: i32) -> (i32, i32) {
    %c0_i32 = arith.constant 0 : i32
    %c0_i32_0 = arith.constant 0 : i32
    %c0_i32_1 = arith.constant 0 : i32
    return %c0_i32, %c0_i32_0 : i32, i32
  }
  func.func @transform_18(%arg0: i32) -> (i32, i32) {
    %c0_i32 = arith.constant 0 : i32
    %c0_i32_0 = arith.constant 0 : i32
    return %arg0, %c0_i32 : i32, i32
  }
}

</mosaic_0001>

<llo_original>
// kernel: tpu_custom_call.1
$region0: #{tpu_custom_call.1}
  #allocation0 [shape = 'u32[]', space=smem, size = 0x4, offset = 0x4, fixed_abs, tag = 'smem constant byte address 0x4 - core index']
  #allocation1 [shape = 'u32[72,128]{1,0:T(1,128)}', space=vmem, size = 0x9000, scoped, tag = 'internal scratch']
  %s0 = inlined_call_operand.vmem [shape: bf16[2,8], index: 0, kind: input, shape index: {}]
  %s1 = inlined_call_operand.vmem [shape: bf16[64,8], index: 1, kind: input, shape index: {}]
  %s2 = inlined_call_operand.vmem [shape: bf16[64,8], index: 2, kind: input, shape index: {}]
  %s3 = inlined_call_operand.vmem [shape: bf16[8,8], index: 3, kind: input, shape index: {}]
  %s4 = inlined_call_operand.vmem [shape: f32[1,8], index: 4, kind: input, shape index: {}]
  %s5 = inlined_call_operand.vmem [shape: bf16[8,8], index: 5, kind: input, shape index: {}]
  %s6 = inlined_call_operand.vmem [shape: f32[1,8], index: 6, kind: input, shape index: {}]
  %s7 = inlined_call_operand.vmem [shape: bf16[8,8], index: 7, kind: input, shape index: {}]
  %s8 = inlined_call_operand.vmem [shape: f32[1,8], index: 8, kind: input, shape index: {}]
  %s9 = inlined_call_operand.vmem [shape: bf16[8,128], index: 9, kind: input, shape index: {}]
  %s10 = inlined_call_operand.vmem [shape: f32[1,128], index: 10, kind: input, shape index: {}]
  %s11 = inlined_call_operand.vmem [shape: bf16[8,64], index: 11, kind: input, shape index: {}]
  %s12 = inlined_call_operand.vmem [shape: bf16[64,64], index: 12, kind: input, shape index: {}]
  %s13 = inlined_call_operand.vmem [shape: bf16[64,64], index: 13, kind: input, shape index: {}]
  %s14 = inlined_call_operand.vmem [shape: bf16[64,64], index: 14, kind: input, shape index: {}]
  %s15 = inlined_call_operand.vmem [shape: bf16[64,8], index: 15, kind: input, shape index: {}]
  %s16 = inlined_call_operand.vmem [shape: bf16[8,64], index: 16, kind: input, shape index: {}]
  %s17 = inlined_call_operand.vmem [shape: bf16[64,2], index: 17, kind: input, shape index: {}]
  %s18 = inlined_call_operand.hbm [shape: f32[64,128], index: 18, kind: output, shape index: {}]
  %s19 = sld [smem:[#allocation0]]
  $region82: #{tpu_custom_call.1} parent=0
    _
  %s21 = ssub.s32 1, %s19
  %s22 = scalar_select 0, %s21, %s19
  $region1: #{tpu_custom_call.1} parent=0
    #allocation2 [shape = 'u8[32768]{0}', space=vmem, size = 0x8000, scoped, tag = 'output window, operand 0, single buffered']
    #allocation3 [shape = 's32[1]{0}', space=sflag, size = 0x4, scoped, tag = 'scoped memory for tpu_custom_call.1']
    %23 = vsyncpa [#allocation3], 0
    // Predicated region
    $region2: #{tpu_custom_call.1} parent=1 // pred_check
      _
    $region3: #{tpu_custom_call.1} parent=1 // pred_check_branch
      %25 = sbr.rel (0) target = $region5
    $region4: #{tpu_custom_call.1} parent=1 // pred_region
      _
    $region5: #{tpu_custom_call.1} parent=1 // pred_fallthru
      _
    // Predicated region
    $region6: #{tpu_custom_call.1} parent=1 // pred_check
      _
    $region7: #{tpu_custom_call.1} parent=1 // pred_check_branch
      %27 = sbr.rel (0) target = $region9
    $region8: #{tpu_custom_call.1} parent=1 // pred_region
      _
    $region9: #{tpu_custom_call.1} parent=1 // pred_fallthru
      _
    // Predicated region
    $region10: #{tpu_custom_call.1} parent=1 // pred_check
      _
    $region11: #{tpu_custom_call.1} parent=1 // pred_check_branch
      %29 = sbr.rel (0) target = $region13
    $region12: #{tpu_custom_call.1} parent=1 // pred_region
      _
    $region13: #{tpu_custom_call.1} parent=1 // pred_fallthru
      _
    // Predicated region
    $region14: #{tpu_custom_call.1} parent=1 // pred_check
      _
    $region15: #{tpu_custom_call.1} parent=1 // pred_check_branch
      %31 = sbr.rel (0) target = $region17
    $region16: #{tpu_custom_call.1} parent=1 // pred_region
      _
    $region17: #{tpu_custom_call.1} parent=1 // pred_fallthru
      _
    // Predicated region
    $region18: #{tpu_custom_call.1} parent=1 // pred_check
      _
    $region19: #{tpu_custom_call.1} parent=1 // pred_check_branch
      %33 = sbr.rel (0) target = $region21
    $region20: #{tpu_custom_call.1} parent=1 // pred_region
      _
    $region21: #{tpu_custom_call.1} parent=1 // pred_fallthru
      _
    // Predicated region
    $region22: #{tpu_custom_call.1} parent=1 // pred_check
      _
    $region23: #{tpu_custom_call.1} parent=1 // pred_check_branch
      %35 = sbr.rel (0) target = $region25
    $region24: #{tpu_custom_call.1} parent=1 // pred_region
      _
    $region25: #{tpu_custom_call.1} parent=1 // pred_fallthru
      _
    // Predicated region
    $region26: #{tpu_custom_call.1} parent=1 // pred_check
      _
    $region27: #{tpu_custom_call.1} parent=1 // pred_check_branch
      %37 = sbr.rel (0) target = $region29
    $region28: #{tpu_custom_call.1} parent=1 // pred_region
      _
    $region29: #{tpu_custom_call.1} parent=1 // pred_fallthru
      _
    // Predicated region
    $region30: #{tpu_custom_call.1} parent=1 // pred_check
      _
    $region31: #{tpu_custom_call.1} parent=1 // pred_check_branch
      %39 = sbr.rel (0) target = $region33
    $region32: #{tpu_custom_call.1} parent=1 // pred_region
      _
    $region33: #{tpu_custom_call.1} parent=1 // pred_fallthru
      _
    // Predicated region
    $region34: #{tpu_custom_call.1} parent=1 // pred_check
      _
    $region35: #{tpu_custom_call.1} parent=1 // pred_check_branch
      %41 = sbr.rel (0) target = $region37
    $region36: #{tpu_custom_call.1} parent=1 // pred_region
      _
    $region37: #{tpu_custom_call.1} parent=1 // pred_fallthru
      _
    // Predicated region
    $region38: #{tpu_custom_call.1} parent=1 // pred_check
      _
    $region39: #{tpu_custom_call.1} parent=1 // pred_check_branch
      %43 = sbr.rel (0) target = $region41
    $region40: #{tpu_custom_call.1} parent=1 // pred_region
      _
    $region41: #{tpu_custom_call.1} parent=1 // pred_fallthru
      _
    // Predicated region
    $region42: #{tpu_custom_call.1} parent=1 // pred_check
      _
    $region43: #{tpu_custom_call.1} parent=1 // pred_check_branch
      %45 = sbr.rel (0) target = $region45
    $region44: #{tpu_custom_call.1} parent=1 // pred_region
      _
    $region45: #{tpu_custom_call.1} parent=1 // pred_fallthru
      _
    // Predicated region
    $region46: #{tpu_custom_call.1} parent=1 // pred_check
      _
    $region47: #{tpu_custom_call.1} parent=1 // pred_check_branch
      %47 = sbr.rel (0) target = $region49
    $region48: #{tpu_custom_call.1} parent=1 // pred_region
      _
    $region49: #{tpu_custom_call.1} parent=1 // pred_fallthru
      _
    // Predicated region
    $region50: #{tpu_custom_call.1} parent=1 // pred_check
      _
    $region51: #{tpu_custom_call.1} parent=1 // pred_check_branch
      %49 = sbr.rel (0) target = $region53
    $region52: #{tpu_custom_call.1} parent=1 // pred_region
      _
    $region53: #{tpu_custom_call.1} parent=1 // pred_fallthru
      _
    // Predicated region
    $region54: #{tpu_custom_call.1} parent=1 // pred_check
      _
    $region55: #{tpu_custom_call.1} parent=1 // pred_check_branch
      %51 = sbr.rel (0) target = $region57
    $region56: #{tpu_custom_call.1} parent=1 // pred_region
      _
    $region57: #{tpu_custom_call.1} parent=1 // pred_fallthru
      _
    // Predicated region
    $region58: #{tpu_custom_call.1} parent=1 // pred_check
      _
    $region59: #{tpu_custom_call.1} parent=1 // pred_check_branch
      %53 = sbr.rel (0) target = $region61
    $region60: #{tpu_custom_call.1} parent=1 // pred_region
      _
    $region61: #{tpu_custom_call.1} parent=1 // pred_fallthru
      _
    // Predicated region
    $region62: #{tpu_custom_call.1} parent=1 // pred_check
      _
    $region63: #{tpu_custom_call.1} parent=1 // pred_check_branch
      %55 = sbr.rel (0) target = $region65
    $region64: #{tpu_custom_call.1} parent=1 // pred_region
      _
    $region65: #{tpu_custom_call.1} parent=1 // pred_fallthru
      _
    // Predicated region
    $region66: #{tpu_custom_call.1} parent=1 // pred_check
      _
    $region67: #{tpu_custom_call.1} parent=1 // pred_check_branch
      %57 = sbr.rel (0) target = $region69
    $region68: #{tpu_custom_call.1} parent=1 // pred_region
      _
    $region69: #{tpu_custom_call.1} parent=1 // pred_fallthru
      _
    // Predicated region
    $region70: #{tpu_custom_call.1} parent=1 // pred_check
      _
    $region71: #{tpu_custom_call.1} parent=1 // pred_check_branch
      %59 = sbr.rel (0) target = $region73
    $region72: #{tpu_custom_call.1} parent=1 // pred_region
      _
    $region73: #{tpu_custom_call.1} parent=1 // pred_fallthru
      _
    %v61 = vld [vmem:[%s1] sm:$0xf]
    %v62 = vld [vmem:[%s1 + $0x4] sm:$0xf]
    %v63 = vld [vmem:[%s1 + $0x8] sm:$0xf]
    %v64 = vld [vmem:[%s1 + $0xc] sm:$0xf]
    %v65 = vld [vmem:[%s1 + $0x10] sm:$0xf]
    %v66 = vld [vmem:[%s1 + $0x14] sm:$0xf]
    %v67 = vld [vmem:[%s1 + $0x18] sm:$0xf]
    %v68 = vld [vmem:[%s1 + $0x1c] sm:$0xf]
    %v69 = vld [vmem:[%s5] sm:$0xf]
    %v70 = vld [vmem:[%s6] sm:$0x1]
    %v72 = vperm.slane %v70, 0
    %v82 = vunpack.c.l.b16 %v61
    %v83 = vunpack.c.l.b16 %v62
    %v84 = vunpack.c.l.b16 %v63
    %v85 = vunpack.c.l.b16 %v64
    %v86 = vunpack.c.l.b16 %v65
    %v87 = vunpack.c.l.b16 %v66
    %v88 = vunpack.c.l.b16 %v67
    %v89 = vunpack.c.l.b16 %v68
    %v90 = vpack.c.b16 %v83, %v82
    %v91 = vpack.c.b16 %v85, %v84
    %v92 = vpack.c.b16 %v87, %v86
    %v93 = vpack.c.b16 %v89, %v88
    %vm94 = vcmask 64512
    %v96 = vsel %vm94, %v90, 0
    %v99 = vsel %vm94, %v91, 0
    %v102 = vsel %vm94, %v92, 0
    %v105 = vsel %vm94, %v93, 0
    %vm107 = vcmask 1043456
    %v109 = vsel %vm107, %v69, 0
    %111 = vmatpush.bf16.msra.mxu0 0
    %112 = vmatpush.bf16.msra.mxu0 0
    %113 = vmatpush.bf16.msra.mxu0 0
    %114 = vmatpush.bf16.msra.mxu0 0
    %115 = vmatpush.bf16.msra.mxu0 0
    %116 = vmatpush.bf16.msra.mxu0 0
    %117 = vmatpush.bf16.msra.mxu0 0
    %118 = vmatpush.bf16.msra.mxu0 %v109
    %119 = vmatmul.bf16.gmra.mxu0 %v96
    %v120 = vpop.f32.mrf.mxu0
    %v121 = vadd.f32 %v72, %v120
    %v122 = vpop.f32.mrf.mxu0
    %v123 = vadd.f32 %v72, %v122
    %124 = vmatmul.bf16.gmra.mxu0 %v99
    %v125 = vpop.f32.mrf.mxu0
    %v126 = vadd.f32 %v72, %v125
    %v127 = vpop.f32.mrf.mxu0
    %v128 = vadd.f32 %v72, %v127
    %129 = vmatmul.bf16.gmra.mxu0 %v102
    %v130 = vpop.f32.mrf.mxu0
    %v131 = vadd.f32 %v72, %v130
    %v132 = vpop.f32.mrf.mxu0
    %v133 = vadd.f32 %v72, %v132
    %134 = vmatmul.bf16.gmra.mxu0 %v105
    %v135 = vpop.f32.mrf.mxu0
    %v136 = vadd.f32 %v72, %v135
    %v137 = vpop.f32.mrf.mxu0
    %v138 = vadd.f32 %v72, %v137
    %139 = vdwg.mxu0
    %v140 = vld [vmem:[%s2] sm:$0xf]
    %v141 = vld [vmem:[%s2 + $0x4] sm:$0xf]
    %v142 = vld [vmem:[%s2 + $0x8] sm:$0xf]
    %v143 = vld [vmem:[%s2 + $0xc] sm:$0xf]
    %v144 = vld [vmem:[%s2 + $0x10] sm:$0xf]
    %v145 = vld [vmem:[%s2 + $0x14] sm:$0xf]
    %v146 = vld [vmem:[%s2 + $0x18] sm:$0xf]
    %v147 = vld [vmem:[%s2 + $0x1c] sm:$0xf]
    %v148 = vld [vmem:[%s7] sm:$0xf]
    %v149 = vld [vmem:[%s8] sm:$0x1]
    %v151 = vperm.slane %v149, 0
    %v161 = vunpack.c.l.b16 %v140
    %v162 = vunpack.c.l.b16 %v141
    %v163 = vunpack.c.l.b16 %v142
    %v164 = vunpack.c.l.b16 %v143
    %v165 = vunpack.c.l.b16 %v144
    %v166 = vunpack.c.l.b16 %v145
    %v167 = vunpack.c.l.b16 %v146
    %v168 = vunpack.c.l.b16 %v147
    %v169 = vpack.c.b16 %v162, %v161
    %v170 = vpack.c.b16 %v164, %v163
    %v171 = vpack.c.b16 %v166, %v165
    %v172 = vpack.c.b16 %v168, %v167
    %v174 = vsel %vm94, %v169, 0
    %v177 = vsel %vm94, %v170, 0
    %v180 = vsel %vm94, %v171, 0
    %v183 = vsel %vm94, %v172, 0
    %v186 = vsel %vm107, %v148, 0
    %188 = vmatpush.bf16.msra.mxu0 0
    %189 = vmatpush.bf16.msra.mxu0 0
    %190 = vmatpush.bf16.msra.mxu0 0
    %191 = vmatpush.bf16.msra.mxu0 0
    %192 = vmatpush.bf16.msra.mxu0 0
    %193 = vmatpush.bf16.msra.mxu0 0
    %194 = vmatpush.bf16.msra.mxu0 0
    %195 = vmatpush.bf16.msra.mxu0 %v186
    %196 = vmatmul.bf16.gmra.mxu0 %v174
    %v197 = vpop.f32.mrf.mxu0
    %v198 = vadd.f32 %v151, %v197
    %v199 = vpop.f32.mrf.mxu0
    %v200 = vadd.f32 %v151, %v199
    %201 = vmatmul.bf16.gmra.mxu0 %v177
    %v202 = vpop.f32.mrf.mxu0
    %v203 = vadd.f32 %v151, %v202
    %v204 = vpop.f32.mrf.mxu0
    %v205 = vadd.f32 %v151, %v204
    %206 = vmatmul.bf16.gmra.mxu0 %v180
    %v207 = vpop.f32.mrf.mxu0
    %v208 = vadd.f32 %v151, %v207
    %v209 = vpop.f32.mrf.mxu0
    %v210 = vadd.f32 %v151, %v209
    %211 = vmatmul.bf16.gmra.mxu0 %v183
    %v212 = vpop.f32.mrf.mxu0
    %v213 = vadd.f32 %v151, %v212
    %v214 = vpop.f32.mrf.mxu0
    %v215 = vadd.f32 %v151, %v214
    %216 = vdwg.mxu0
    %v217 = vld [vmem:[%s0] sm:$0x1]
    %v218 = vld [vmem:[%s3] sm:$0xf]
    %v219 = vld [vmem:[%s4] sm:$0x1]
    %v221 = vperm.slane %v219, 0
    %v224 = vsel %vm94, %v217, 0
    %v227 = vsel %vm107, %v218, 0
    %229 = vmatpush.bf16.msra.mxu0 0
    %230 = vmatpush.bf16.msra.mxu0 0
    %231 = vmatpush.bf16.msra.mxu0 0
    %232 = vmatpush.bf16.msra.mxu0 0
    %233 = vmatpush.bf16.msra.mxu0 0
    %234 = vmatpush.bf16.msra.mxu0 0
    %235 = vmatpush.bf16.msra.mxu0 0
    %236 = vmatpush.bf16.msra.mxu0 %v227
    %237 = vmatmul.bf16.gmra.mxu0 %v224
    %v238 = vpop.f32.mrf.mxu0
    %v239 = vadd.f32 %v221, %v238
    %v240 = vpop.f32.mrf.mxu0
    %241 = vdwg.mxu0
    %v242 = vpack.c.bf16 %v239, %v239
    %v243 = vld [vmem:[%s11] sm:$0xf]
    %v245 = vsel %vm94, %v242, 0
    %v248 = vsel %vm107, %v243, 0
    %250 = vmatpush.bf16.msra.mxu0 0
    %251 = vmatpush.bf16.msra.mxu0 0
    %252 = vmatpush.bf16.msra.mxu0 0
    %253 = vmatpush.bf16.msra.mxu0 0
    %254 = vmatpush.bf16.msra.mxu0 0
    %255 = vmatpush.bf16.msra.mxu0 0
    %256 = vmatpush.bf16.msra.mxu0 0
    %257 = vmatpush.bf16.msra.mxu0 %v248
    %258 = vmatmul.bf16.gmra.mxu0 %v245
    %v259 = vpop.f32.mrf.mxu0
    %v260 = vadd.f32 0.0, %v259
    %v261 = vpop.f32.mrf.mxu0
    %262 = vdwg.mxu0
    %v263 = vld [vmem:[%s17] sm:$0xf]
    %v264 = vld [vmem:[%s17 + $0x4] sm:$0xf]
    %v265 = vld [vmem:[%s17 + $0x8] sm:$0xf]
    %v266 = vld [vmem:[%s17 + $0xc] sm:$0xf]
    %v267 = vld [vmem:[%s17 + $0x10] sm:$0xf]
    %v268 = vld [vmem:[%s17 + $0x14] sm:$0xf]
    %v269 = vld [vmem:[%s17 + $0x18] sm:$0xf]
    %v270 = vld [vmem:[%s17 + $0x1c] sm:$0xf]
    %v271 = vpack.c.bf16 %v260, %v260
    %v280 = vunpack.c.l.b16 %v263
    %v281 = vunpack.c.l.b16 %v264
    %v282 = vunpack.c.l.b16 %v265
    %v283 = vunpack.c.l.b16 %v266
    %v284 = vunpack.c.l.b16 %v267
    %v285 = vunpack.c.l.b16 %v268
    %v286 = vunpack.c.l.b16 %v269
    %v287 = vunpack.c.l.b16 %v270
    %v288 = vpack.c.b16 %v281, %v280
    %v289 = vpack.c.b16 %v283, %v282
    %v290 = vpack.c.b16 %v285, %v284
    %v291 = vpack.c.b16 %v287, %v286
    %vm292 = vcmask 15360
    %v294 = vsel %vm292, %v288, 0
    %v297 = vsel %vm292, %v289, 0
    %v300 = vsel %vm292, %v290, 0
    %v303 = vsel %vm292, %v291, 0
    %vm305 = vcmask 1040384
    %v307 = vsel %vm305, %v271, 0
    %309 = vmatpush.bf16.msra.mxu0 0
    %310 = vmatpush.bf16.msra.mxu0 0
    %311 = vmatpush.bf16.msra.mxu0 0
    %312 = vmatpush.bf16.msra.mxu0 0
    %313 = vmatpush.bf16.msra.mxu0 0
    %314 = vmatpush.bf16.msra.mxu0 0
    %315 = vmatpush.bf16.msra.mxu0 0
    %316 = vmatpush.bf16.msra.mxu0 %v307
    %317 = vmatmul.bf16.gmra.mxu0 %v294
    %v318 = vpop.f32.mrf.mxu0
    %v319 = vadd.f32 0.0, %v318
    %v320 = vpop.f32.mrf.mxu0
    %v321 = vadd.f32 0.0, %v320
    %322 = vmatmul.bf16.gmra.mxu0 %v297
    %v323 = vpop.f32.mrf.mxu0
    %v324 = vadd.f32 0.0, %v323
    %v325 = vpop.f32.mrf.mxu0
    %v326 = vadd.f32 0.0, %v325
    %327 = vmatmul.bf16.gmra.mxu0 %v300
    %v328 = vpop.f32.mrf.mxu0
    %v329 = vadd.f32 0.0, %v328
    %v330 = vpop.f32.mrf.mxu0
    %v331 = vadd.f32 0.0, %v330
    %332 = vmatmul.bf16.gmra.mxu0 %v303
    %v333 = vpop.f32.mrf.mxu0
    %v334 = vadd.f32 0.0, %v333
    %v335 = vpop.f32.mrf.mxu0
    %v336 = vadd.f32 0.0, %v335
    %337 = vdwg.mxu0
    %v338 = vpack.c.bf16 %v123, %v121
    %v339 = vpack.c.bf16 %v128, %v126
    %v340 = vpack.c.bf16 %v133, %v131
    %v341 = vpack.c.bf16 %v138, %v136
    %v342 = vld [vmem:[%s16] sm:$0xf]
    %v344 = vsel %vm94, %v338, 0
    %v347 = vsel %vm94, %v339, 0
    %v350 = vsel %vm94, %v340, 0
    %v353 = vsel %vm94, %v341, 0
    %v356 = vsel %vm107, %v342, 0
    %358 = vmatpush.bf16.msra.mxu0 0
    %359 = vmatpush.bf16.msra.mxu0 0
    %360 = vmatpush.bf16.msra.mxu0 0
    %361 = vmatpush.bf16.msra.mxu0 0
    %362 = vmatpush.bf16.msra.mxu0 0
    %363 = vmatpush.bf16.msra.mxu0 0
    %364 = vmatpush.bf16.msra.mxu0 0
    %365 = vmatpush.bf16.msra.mxu0 %v356
    %366 = vmatmul.bf16.gmra.mxu0 %v344
    %v367 = vpop.f32.mrf.mxu0
    %v368 = vadd.f32 0.0, %v367
    %v369 = vpop.f32.mrf.mxu0
    %v370 = vadd.f32 0.0, %v369
    %371 = vmatmul.bf16.gmra.mxu0 %v347
    %v372 = vpop.f32.mrf.mxu0
    %v373 = vadd.f32 0.0, %v372
    %v374 = vpop.f32.mrf.mxu0
    %v375 = vadd.f32 0.0, %v374
    %376 = vmatmul.bf16.gmra.mxu0 %v350
    %v377 = vpop.f32.mrf.mxu0
    %v378 = vadd.f32 0.0, %v377
    %v379 = vpop.f32.mrf.mxu0
    %v380 = vadd.f32 0.0, %v379
    %381 = vmatmul.bf16.gmra.mxu0 %v353
    %v382 = vpop.f32.mrf.mxu0
    %v383 = vadd.f32 0.0, %v382
    %v384 = vpop.f32.mrf.mxu0
    %v385 = vadd.f32 0.0, %v384
    %386 = vdwg.mxu0
    %v387 = vmul.f32 %v368, %v319
    %v388 = vmul.f32 %v370, %v321
    %v389 = vmul.f32 %v373, %v324
    %v390 = vmul.f32 %v375, %v326
    %v391 = vmul.f32 %v378, %v329
    %v392 = vmul.f32 %v380, %v331
    %v393 = vmul.f32 %v383, %v334
    %v394 = vmul.f32 %v385, %v336
    %v395 = vpack.c.bf16 %v388, %v387
    %v396 = vpack.c.bf16 %v390, %v389
    %v397 = vpack.c.bf16 %v392, %v391
    %v398 = vpack.c.bf16 %v394, %v393
    %v399 = vld [vmem:[%s12] sm:$0xf]
    %v400 = vld [vmem:[%s12 + $0x4] sm:$0xf]
    %v401 = vld [vmem:[%s12 + $0x8] sm:$0xf]
    %v402 = vld [vmem:[%s12 + $0xc] sm:$0xf]
    %v403 = vld [vmem:[%s12 + $0x10] sm:$0xf]
    %v404 = vld [vmem:[%s12 + $0x14] sm:$0xf]
    %v405 = vld [vmem:[%s12 + $0x18] sm:$0xf]
    %v406 = vld [vmem:[%s12 + $0x1c] sm:$0xf]
    %v415 = vunpack.c.l.b16 %v399
    %v416 = vunpack.c.l.b16 %v400
    %v417 = vunpack.c.l.b16 %v401
    %v418 = vunpack.c.l.b16 %v402
    %v419 = vunpack.c.l.b16 %v403
    %v420 = vunpack.c.l.b16 %v404
    %v421 = vunpack.c.l.b16 %v405
    %v422 = vunpack.c.l.b16 %v406
    %v423 = vpack.c.b16 %v416, %v415
    %v424 = vpack.c.b16 %v418, %v417
    %v425 = vpack.c.b16 %v420, %v419
    %v426 = vpack.c.b16 %v422, %v421
    %vm431 = vcmask 523264
    %v433 = vsel %vm431, %v395, 0
    %v436 = vsel %vm431, %v396, 0
    %v439 = vsel %vm431, %v397, 0
    %v442 = vsel %vm431, %v398, 0
    %444 = vmatpush.bf16.msra.mxu0 0
    %445 = vmatpush.bf16.msra.mxu0 0
    %446 = vmatpush.bf16.msra.mxu0 0
    %447 = vmatpush.bf16.msra.mxu0 0
    %448 = vmatpush.bf16.msra.mxu0 %v426
    %449 = vmatpush.bf16.msra.mxu0 %v425
    %450 = vmatpush.bf16.msra.mxu0 %v424
    %451 = vmatpush.bf16.msra.mxu0 %v423
    %452 = vmatmul.bf16.gmra.mxu0 %v433
    %v453 = vpop.f32.mrf.mxu0
    %v454 = vadd.f32 0.0, %v453
    %v455 = vpop.f32.mrf.mxu0
    %v456 = vadd.f32 0.0, %v455
    %457 = vmatmul.bf16.gmra.mxu0 %v436
    %v458 = vpop.f32.mrf.mxu0
    %v459 = vadd.f32 0.0, %v458
    %v460 = vpop.f32.mrf.mxu0
    %v461 = vadd.f32 0.0, %v460
    %462 = vmatmul.bf16.gmra.mxu0 %v439
    %v463 = vpop.f32.mrf.mxu0
    %v464 = vadd.f32 0.0, %v463
    %v465 = vpop.f32.mrf.mxu0
    %v466 = vadd.f32 0.0, %v465
    %467 = vmatmul.bf16.gmra.mxu0 %v442
    %v468 = vpop.f32.mrf.mxu0
    %v469 = vadd.f32 0.0, %v468
    %v470 = vpop.f32.mrf.mxu0
    %v471 = vadd.f32 0.0, %v470
    %472 = vdwg.mxu0
    %v473 = vsel %vm431, %v454, -inf
    %474 = vmax.xlane.f32.xlu0 %v473
    %v475 = vpop.xlane.xlu0 %474
    %v476 = vsel %vm431, %v456, -inf
    %477 = vmax.xlane.f32.xlu0 %v476
    %v478 = vpop.xlane.xlu0 %477
    %v479 = vsel %vm431, %v459, -inf
    %480 = vmax.xlane.f32.xlu0 %v479
    %v481 = vpop.xlane.xlu0 %480
    %v482 = vsel %vm431, %v461, -inf
    %483 = vmax.xlane.f32.xlu0 %v482
    %v484 = vpop.xlane.xlu0 %483
    %v485 = vsel %vm431, %v464, -inf
    %486 = vmax.xlane.f32.xlu0 %v485
    %v487 = vpop.xlane.xlu0 %486
    %v488 = vsel %vm431, %v466, -inf
    %489 = vmax.xlane.f32.xlu0 %v488
    %v490 = vpop.xlane.xlu0 %489
    %v491 = vsel %vm431, %v469, -inf
    %492 = vmax.xlane.f32.xlu0 %v491
    %v493 = vpop.xlane.xlu0 %492
    %v494 = vsel %vm431, %v471, -inf
    %495 = vmax.xlane.f32.xlu0 %v494
    %v496 = vpop.xlane.xlu0 %495
    %v497 = vsub.f32 %v454, %v475
    %v498 = vsub.f32 %v456, %v478
    %v499 = vsub.f32 %v459, %v481
    %v500 = vsub.f32 %v461, %v484
    %v501 = vsub.f32 %v464, %v487
    %v502 = vsub.f32 %v466, %v490
    %v503 = vsub.f32 %v469, %v493
    %v504 = vsub.f32 %v471, %v496
    %v505 = vmul.f32 %v497, 1.442695
    %v506 = vpow.pop %v505
    %v507 = vmul.f32 %v498, 1.442695
    %v508 = vpow.pop %v507
    %v509 = vmul.f32 %v499, 1.442695
    %v510 = vpow.pop %v509
    %v511 = vmul.f32 %v500, 1.442695
    %v512 = vpow.pop %v511
    %v513 = vmul.f32 %v501, 1.442695
    %v514 = vpow.pop %v513
    %v515 = vmul.f32 %v502, 1.442695
    %v516 = vpow.pop %v515
    %v517 = vmul.f32 %v503, 1.442695
    %v518 = vpow.pop %v517
    %v519 = vmul.f32 %v504, 1.442695
    %v520 = vpow.pop %v519
    %v521 = vpack.c.bf16 %v508, %v506
    %v522 = vpack.c.bf16 %v512, %v510
    %v523 = vpack.c.bf16 %v516, %v514
    %v524 = vpack.c.bf16 %v520, %v518
    %v525 = vld [vmem:[%s13] sm:$0xf]
    %v526 = vld [vmem:[%s13 + $0x4] sm:$0xf]
    %v527 = vld [vmem:[%s13 + $0x8] sm:$0xf]
    %v528 = vld [vmem:[%s13 + $0xc] sm:$0xf]
    %v529 = vld [vmem:[%s13 + $0x10] sm:$0xf]
    %v530 = vld [vmem:[%s13 + $0x14] sm:$0xf]
    %v531 = vld [vmem:[%s13 + $0x18] sm:$0xf]
    %v532 = vld [vmem:[%s13 + $0x1c] sm:$0xf]
    %v541 = vunpack.c.l.b16 %v525
    %v542 = vunpack.c.l.b16 %v526
    %v543 = vunpack.c.l.b16 %v527
    %v544 = vunpack.c.l.b16 %v528
    %v545 = vunpack.c.l.b16 %v529
    %v546 = vunpack.c.l.b16 %v530
    %v547 = vunpack.c.l.b16 %v531
    %v548 = vunpack.c.l.b16 %v532
    %v549 = vpack.c.b16 %v542, %v541
    %v550 = vpack.c.b16 %v544, %v543
    %v551 = vpack.c.b16 %v546, %v545
    %v552 = vpack.c.b16 %v548, %v547
    %v558 = vsel %vm431, %v521, 0
    %v561 = vsel %vm431, %v522, 0
    %v564 = vsel %vm431, %v523, 0
    %v567 = vsel %vm431, %v524, 0
    %569 = vmatpush.bf16.msra.mxu0 0
    %570 = vmatpush.bf16.msra.mxu0 0
    %571 = vmatpush.bf16.msra.mxu0 0
    %572 = vmatpush.bf16.msra.mxu0 0
    %573 = vmatpush.bf16.msra.mxu0 %v552
    %574 = vmatpush.bf16.msra.mxu0 %v551
    %575 = vmatpush.bf16.msra.mxu0 %v550
    %576 = vmatpush.bf16.msra.mxu0 %v549
    %577 = vmatmul.bf16.gmra.mxu0 %v558
    %v578 = vpop.f32.mrf.mxu0
    %v579 = vadd.f32 0.0, %v578
    %v580 = vpop.f32.mrf.mxu0
    %v581 = vadd.f32 0.0, %v580
    %582 = vmatmul.bf16.gmra.mxu0 %v561
    %v583 = vpop.f32.mrf.mxu0
    %v584 = vadd.f32 0.0, %v583
    %v585 = vpop.f32.mrf.mxu0
    %v586 = vadd.f32 0.0, %v585
    %587 = vmatmul.bf16.gmra.mxu0 %v564
    %v588 = vpop.f32.mrf.mxu0
    %v589 = vadd.f32 0.0, %v588
    %v590 = vpop.f32.mrf.mxu0
    %v591 = vadd.f32 0.0, %v590
    %592 = vmatmul.bf16.gmra.mxu0 %v567
    %v593 = vpop.f32.mrf.mxu0
    %v594 = vadd.f32 0.0, %v593
    %v595 = vpop.f32.mrf.mxu0
    %v596 = vadd.f32 0.0, %v595
    %597 = vdwg.mxu0
    %v598 = vrcp.pop %v579
    %v599 = vrcp.pop %v581
    %v600 = vrcp.pop %v584
    %v601 = vrcp.pop %v586
    %v602 = vrcp.pop %v589
    %v603 = vrcp.pop %v591
    %v604 = vrcp.pop %v594
    %v605 = vrcp.pop %v596
    %v606 = vmul.f32 %v506, %v598
    %v607 = vmul.f32 %v508, %v599
    %v608 = vmul.f32 %v510, %v600
    %v609 = vmul.f32 %v512, %v601
    %v610 = vmul.f32 %v514, %v602
    %v611 = vmul.f32 %v516, %v603
    %v612 = vmul.f32 %v518, %v604
    %v613 = vmul.f32 %v520, %v605
    %v614 = vpack.c.bf16 %v607, %v606
    %v615 = vpack.c.bf16 %v609, %v608
    %v616 = vpack.c.bf16 %v611, %v610
    %v617 = vpack.c.bf16 %v613, %v612
    %v618 = vld [vmem:[%s14] sm:$0xf]
    %v619 = vld [vmem:[%s14 + $0x4] sm:$0xf]
    %v620 = vld [vmem:[%s14 + $0x8] sm:$0xf]
    %v621 = vld [vmem:[%s14 + $0xc] sm:$0xf]
    %v622 = vld [vmem:[%s14 + $0x10] sm:$0xf]
    %v623 = vld [vmem:[%s14 + $0x14] sm:$0xf]
    %v624 = vld [vmem:[%s14 + $0x18] sm:$0xf]
    %v625 = vld [vmem:[%s14 + $0x1c] sm:$0xf]
    %v634 = vunpack.c.l.b16 %v618
    %v635 = vunpack.c.l.b16 %v619
    %v636 = vunpack.c.l.b16 %v620
    %v637 = vunpack.c.l.b16 %v621
    %v638 = vunpack.c.l.b16 %v622
    %v639 = vunpack.c.l.b16 %v623
    %v640 = vunpack.c.l.b16 %v624
    %v641 = vunpack.c.l.b16 %v625
    %v642 = vpack.c.b16 %v635, %v634
    %v643 = vpack.c.b16 %v637, %v636
    %v644 = vpack.c.b16 %v639, %v638
    %v645 = vpack.c.b16 %v641, %v640
    %v651 = vsel %vm431, %v614, 0
    %v654 = vsel %vm431, %v615, 0
    %v657 = vsel %vm431, %v616, 0
    %v660 = vsel %vm431, %v617, 0
    %662 = vmatpush.bf16.msra.mxu0 0
    %663 = vmatpush.bf16.msra.mxu0 0
    %664 = vmatpush.bf16.msra.mxu0 0
    %665 = vmatpush.bf16.msra.mxu0 0
    %666 = vmatpush.bf16.msra.mxu0 %v645
    %667 = vmatpush.bf16.msra.mxu0 %v644
    %668 = vmatpush.bf16.msra.mxu0 %v643
    %669 = vmatpush.bf16.msra.mxu0 %v642
    %670 = vmatmul.bf16.gmra.mxu0 %v651
    %v671 = vpop.f32.mrf.mxu0
    %v672 = vadd.f32 0.0, %v671
    %v673 = vpop.f32.mrf.mxu0
    %v674 = vadd.f32 0.0, %v673
    %675 = vmatmul.bf16.gmra.mxu0 %v654
    %v676 = vpop.f32.mrf.mxu0
    %v677 = vadd.f32 0.0, %v676
    %v678 = vpop.f32.mrf.mxu0
    %v679 = vadd.f32 0.0, %v678
    %680 = vmatmul.bf16.gmra.mxu0 %v657
    %v681 = vpop.f32.mrf.mxu0
    %v682 = vadd.f32 0.0, %v681
    %v683 = vpop.f32.mrf.mxu0
    %v684 = vadd.f32 0.0, %v683
    %685 = vmatmul.bf16.gmra.mxu0 %v660
    %v686 = vpop.f32.mrf.mxu0
    %v687 = vadd.f32 0.0, %v686
    %v688 = vpop.f32.mrf.mxu0
    %v689 = vadd.f32 0.0, %v688
    %690 = vdwg.mxu0
    %v691 = vpack.c.bf16 %v200, %v198
    %v692 = vpack.c.bf16 %v205, %v203
    %v693 = vpack.c.bf16 %v210, %v208
    %v694 = vpack.c.bf16 %v215, %v213
    %v696 = vsel %vm94, %v691, 0
    %v699 = vsel %vm94, %v692, 0
    %v702 = vsel %vm94, %v693, 0
    %v705 = vsel %vm94, %v694, 0
    %707 = vmatpush.bf16.msra.mxu0 0
    %708 = vmatpush.bf16.msra.mxu0 0
    %709 = vmatpush.bf16.msra.mxu0 0
    %710 = vmatpush.bf16.msra.mxu0 0
    %711 = vmatpush.bf16.msra.mxu0 0
    %712 = vmatpush.bf16.msra.mxu0 0
    %713 = vmatpush.bf16.msra.mxu0 0
    %714 = vmatpush.bf16.msra.mxu0 %v248
    %715 = vmatmul.bf16.gmra.mxu0 %v696
    %v716 = vpop.f32.mrf.mxu0
    %v717 = vadd.f32 0.0, %v716
    %v718 = vpop.f32.mrf.mxu0
    %v719 = vadd.f32 0.0, %v718
    %720 = vmatmul.bf16.gmra.mxu0 %v699
    %v721 = vpop.f32.mrf.mxu0
    %v722 = vadd.f32 0.0, %v721
    %v723 = vpop.f32.mrf.mxu0
    %v724 = vadd.f32 0.0, %v723
    %725 = vmatmul.bf16.gmra.mxu0 %v702
    %v726 = vpop.f32.mrf.mxu0
    %v727 = vadd.f32 0.0, %v726
    %v728 = vpop.f32.mrf.mxu0
    %v729 = vadd.f32 0.0, %v728
    %730 = vmatmul.bf16.gmra.mxu0 %v705
    %v731 = vpop.f32.mrf.mxu0
    %v732 = vadd.f32 0.0, %v731
    %v733 = vpop.f32.mrf.mxu0
    %v734 = vadd.f32 0.0, %v733
    %735 = vdwg.mxu0
    %v736 = vmul.f32 %v672, %v717
    %v737 = vmul.f32 %v674, %v719
    %v738 = vmul.f32 %v677, %v722
    %v739 = vmul.f32 %v679, %v724
    %v740 = vmul.f32 %v682, %v727
    %v741 = vmul.f32 %v684, %v729
    %v742 = vmul.f32 %v687, %v732
    %v743 = vmul.f32 %v689, %v734
    %v744 = vpack.c.bf16 %v737, %v736
    %v745 = vpack.c.bf16 %v739, %v738
    %v746 = vpack.c.bf16 %v741, %v740
    %v747 = vpack.c.bf16 %v743, %v742
    %v748 = vld [vmem:[%s15] sm:$0xf]
    %v749 = vld [vmem:[%s15 + $0x4] sm:$0xf]
    %v750 = vld [vmem:[%s15 + $0x8] sm:$0xf]
    %v751 = vld [vmem:[%s15 + $0xc] sm:$0xf]
    %v752 = vld [vmem:[%s15 + $0x10] sm:$0xf]
    %v753 = vld [vmem:[%s15 + $0x14] sm:$0xf]
    %v754 = vld [vmem:[%s15 + $0x18] sm:$0xf]
    %v755 = vld [vmem:[%s15 + $0x1c] sm:$0xf]
    %v764 = vunpack.c.l.b16 %v748
    %v765 = vunpack.c.l.b16 %v749
    %v766 = vunpack.c.l.b16 %v750
    %v767 = vunpack.c.l.b16 %v751
    %v768 = vunpack.c.l.b16 %v752
    %v769 = vunpack.c.l.b16 %v753
    %v770 = vunpack.c.l.b16 %v754
    %v771 = vunpack.c.l.b16 %v755
    %v772 = vpack.c.b16 %v765, %v764
    %v773 = vpack.c.b16 %v767, %v766
    %v774 = vpack.c.b16 %v769, %v768
    %v775 = vpack.c.b16 %v771, %v770
    %v781 = vsel %vm431, %v744, 0
    %v784 = vsel %vm431, %v745, 0
    %v787 = vsel %vm431, %v746, 0
    %v790 = vsel %vm431, %v747, 0
    %792 = vmatpush.bf16.msra.mxu0 0
    %793 = vmatpush.bf16.msra.mxu0 0
    %794 = vmatpush.bf16.msra.mxu0 0
    %795 = vmatpush.bf16.msra.mxu0 0
    %796 = vmatpush.bf16.msra.mxu0 %v775
    %797 = vmatpush.bf16.msra.mxu0 %v774
    %798 = vmatpush.bf16.msra.mxu0 %v773
    %799 = vmatpush.bf16.msra.mxu0 %v772
    %800 = vmatmul.bf16.gmra.mxu0 %v781
    %v801 = vpop.f32.mrf.mxu0
    %v802 = vadd.f32 0.0, %v801
    %v803 = vpop.f32.mrf.mxu0
    %v804 = vadd.f32 0.0, %v803
    %805 = vmatmul.bf16.gmra.mxu0 %v784
    %v806 = vpop.f32.mrf.mxu0
    %v807 = vadd.f32 0.0, %v806
    %v808 = vpop.f32.mrf.mxu0
    %v809 = vadd.f32 0.0, %v808
    %810 = vmatmul.bf16.gmra.mxu0 %v787
    %v811 = vpop.f32.mrf.mxu0
    %v812 = vadd.f32 0.0, %v811
    %v813 = vpop.f32.mrf.mxu0
    %v814 = vadd.f32 0.0, %v813
    %815 = vmatmul.bf16.gmra.mxu0 %v790
    %v816 = vpop.f32.mrf.mxu0
    %v817 = vadd.f32 0.0, %v816
    %v818 = vpop.f32.mrf.mxu0
    %v819 = vadd.f32 0.0, %v818
    %820 = vdwg.mxu0
    %v821 = vpack.c.bf16 %v804, %v802
    %v822 = vpack.c.bf16 %v809, %v807
    %v823 = vpack.c.bf16 %v814, %v812
    %v824 = vpack.c.bf16 %v819, %v817
    %v825 = vld [vmem:[%s9] sm:$0xf]
    %v826 = vld [vmem:[%s10] sm:$0x1]
    %v828 = vperm.slane %v826, 0
    %v831 = vsel %vm94, %v821, 0
    %v834 = vsel %vm94, %v822, 0
    %v837 = vsel %vm94, %v823, 0
    %v840 = vsel %vm94, %v824, 0
    %v843 = vsel %vm107, %v825, 0
    %845 = vmatpush.bf16.msra.mxu0 0
    %846 = vmatpush.bf16.msra.mxu0 0
    %847 = vmatpush.bf16.msra.mxu0 0
    %848 = vmatpush.bf16.msra.mxu0 0
    %849 = vmatpush.bf16.msra.mxu0 0
    %850 = vmatpush.bf16.msra.mxu0 0
    %851 = vmatpush.bf16.msra.mxu0 0
    %852 = vmatpush.bf16.msra.mxu0 %v843
    %853 = vmatmul.bf16.gmra.mxu0 %v831
    %v854 = vpop.f32.mrf.mxu0
    %v855 = vadd.f32 %v828, %v854
    %v856 = vpop.f32.mrf.mxu0
    %v857 = vadd.f32 %v828, %v856
    %858 = vmatmul.bf16.gmra.mxu0 %v834
    %v859 = vpop.f32.mrf.mxu0
    %v860 = vadd.f32 %v828, %v859
    %v861 = vpop.f32.mrf.mxu0
    %v862 = vadd.f32 %v828, %v861
    %863 = vmatmul.bf16.gmra.mxu0 %v837
    %v864 = vpop.f32.mrf.mxu0
    %v865 = vadd.f32 %v828, %v864
    %v866 = vpop.f32.mrf.mxu0
    %v867 = vadd.f32 %v828, %v866
    %868 = vmatmul.bf16.gmra.mxu0 %v840
    %v869 = vpop.f32.mrf.mxu0
    %v870 = vadd.f32 %v828, %v869
    %v871 = vpop.f32.mrf.mxu0
    %v872 = vadd.f32 %v828, %v871
    %873 = vdwg.mxu0
    %874 = vst [vmem:[#allocation2] sm:$0xff] %v855
    %875 = vst [vmem:[#allocation2 + $0x8] sm:$0xff] %v857
    %876 = vst [vmem:[#allocation2 + $0x10] sm:$0xff] %v860
    %877 = vst [vmem:[#allocation2 + $0x18] sm:$0xff] %v862
    %878 = vst [vmem:[#allocation2 + $0x20] sm:$0xff] %v865
    %879 = vst [vmem:[#allocation2 + $0x28] sm:$0xff] %v867
    %880 = vst [vmem:[#allocation2 + $0x30] sm:$0xff] %v870
    %881 = vst [vmem:[#allocation2 + $0x38] sm:$0xff] %v872
    // Predicated region
    $region74: #{tpu_custom_call.1} parent=1 // pred_check
      _
    $region75: #{tpu_custom_call.1} parent=1 // pred_check_branch
      %883 = sbr.rel (0) target = $region77
    $region76: #{tpu_custom_call.1} parent=1 // pred_region
      %885 = vsyncadd [#allocation3], 0
      %s886 = sshll.u32 [#allocation2], 4
      %s887 = int_to_ptr.vmem [resolvable:$true] %s886
      %s888 = sshll.u32 %s18, 4
      %s889 = int_to_ptr.hbm [resolvable:$true] %s888
      %894 = dma.vmem_to_hbm [thread:$0]  %s887, 1024, %s889, [#allocation3], 128, 128, 8
    $region77: #{tpu_custom_call.1} parent=1 // pred_fallthru
      _
    // Predicated region
    $region78: #{tpu_custom_call.1} parent=1 // pred_check
      _
    $region79: #{tpu_custom_call.1} parent=1 // pred_check_branch
      %896 = sbr.rel (0) target = $region81
    $region80: #{tpu_custom_call.1} parent=1 // pred_region
      %898 = dma.done [#allocation3], 1024
    $region81: #{tpu_custom_call.1} parent=1 // pred_fallthru
      _
    %899 = vsyncpa [#allocation3], 1

</llo_original>
